<compile_context>
chip_gen: v7x
topology: tpu7x:2x2x1
jax: 0.10.0
libtpu: 0.0.40
codegen_flags: <defaults>
</compile_context>

<pallas_src>
import math

import jax
import jax.numpy as jnp
from jax.experimental import pallas as pl
from jax.experimental.pallas import tpu as pltpu


_LANE = 128                 # last block dim granularity (vreg lanes)
_SUBLANE = 8                # second-to-last block dim granularity (vreg sublanes)
_MAX_FLAT_ROW_TILE = 256    # cap on the batch-row tile in the flat layout

_BLOCK_BYTES_CACHE = None


def _default_block_bytes() -> int:
    """Generation-aware target bytes for one x block.

    ~2 MiB is the safe sweet spot on v5e/v6e (fits the 16/32 MiB scoped-VMEM
    defaults when double-buffered alongside the output and PE blocks).  Chips
    reporting <= 64 MiB of VMEM (v7x-class, ~3.2 TB/s HBM) get ~4 MiB blocks so
    the ~0.35 us per-step overhead stays hidden behind HBM time.
    """
    global _BLOCK_BYTES_CACHE
    if _BLOCK_BYTES_CACHE is None:
        target = 2 * 1024 * 1024
        try:
            info = pltpu.get_tpu_info()
            vmem = getattr(info, "vmem_capacity_bytes", None)
            if vmem is not None and int(vmem) <= 64 * 1024 * 1024:
                target = 4 * 1024 * 1024
        except Exception:
            target = 2 * 1024 * 1024
        _BLOCK_BYTES_CACHE = target
    return _BLOCK_BYTES_CACHE


def make_positional_embeddings(d_model: int, max_seq_len: int) -> jnp.ndarray:
    """Replicates PositionalEmbeddings.__init__ buffer `pe`: (1, max_seq_len, d_model)."""
    assert d_model % 2 == 0
    pos = jnp.arange(0, max_seq_len, dtype=jnp.float32)                  # (L,)
    exp = jnp.arange(0, d_model, 2, dtype=jnp.float32) / float(d_model)  # (d_model/2,)
    freq = jnp.exp(exp * -math.log(10000.0))                             # (d_model/2,)
    freq = jnp.einsum("i,j->ij", pos, freq)                              # (L, d_model/2)
    pe = jnp.zeros((max_seq_len, d_model), dtype=jnp.float32)
    pe = pe.at[:, 0::2].set(jnp.sin(freq))
    pe = pe.at[:, 1::2].set(jnp.cos(freq))
    return pe[None, :, :]                                                # (1, L, d_model)


def _floor_multiple(x: int, m: int) -> int:
    return (x // m) * m


def _seq_tiles(S: int, D: int, budget_elems: int) -> tuple[int, int]:
    """(tile_s, tile_d) for the seq-major layout: x (B, S, D), pe (L, D)."""
    if D >= _LANE:
        td = _floor_multiple(min(D, max(budget_elems // _SUBLANE, _LANE)), _LANE)
        td = max(td, _LANE)
    else:
        td = D                              # short lane dim: full extent (legal block)
    rows_budget = max(budget_elems // max(td, 1), _SUBLANE)
    if S >= _SUBLANE:
        ts = _floor_multiple(min(S, rows_budget), _SUBLANE)
        ts = max(ts, _SUBLANE)
    else:
        ts = S
    return ts, td


def _flat_tiles(B: int, N: int, budget_elems: int) -> tuple[int, int]:
    """(tile_rows, tile_cols) for the batch-major flat layout: x (B, S*D)."""
    tr = max(min(_floor_multiple(B, _SUBLANE), _MAX_FLAT_ROW_TILE), _SUBLANE)
    if N >= _LANE:
        tc = _floor_multiple(min(N, max(budget_elems // tr, _LANE)), _LANE)
        tc = max(tc, _LANE)
    else:
        tc = N
    return tr, tc


def _add_pe_kernel(x_ref, pe_ref, o_ref):
    # Plain VPU add.  pe_ref is either shape-matched (seq-major, (ts, td)) or a
    # (1, tc) sublane-broadcast row (batch-major flat).  The astype covers
    # PyTorch-style type promotion (e.g. bf16 x + f32 pe -> f32 out).
    o_ref[...] = (x_ref[...] + pe_ref[...]).astype(o_ref.dtype)


def _add_pe_seq_major(x, pe2d, out_dtype, budget_bytes, donate_x):
    """x: (B, S, D); pe2d: (L, D) with L >= S.  Grid (S-tiles, D-tiles, B)."""
    B, S, D = x.shape
    itemsize = max(x.dtype.itemsize, out_dtype.itemsize)
    budget_elems = max(budget_bytes // itemsize, _SUBLANE * _LANE)
    ts, td = _seq_tiles(S, D, budget_elems)
    grid = (pl.cdiv(S, ts), pl.cdiv(D, td), B)   # batch innermost -> PE block reused
    alias = {0: 0} if (donate_x and out_dtype == x.dtype) else {}

    return pl.pallas_call(
        _add_pe_kernel,
        out_shape=jax.ShapeDtypeStruct((B, S, D), out_dtype),
        grid_spec=pltpu.PrefetchScalarGridSpec(
            num_scalar_prefetch=0,
            grid=grid,
            in_specs=[
                # Batch dim squeezed out of the block -> plain 2-D add in the body.
                pl.BlockSpec((None, ts, td), lambda i, j, b: (b, i, j)),   # x
                pl.BlockSpec((ts, td), lambda i, j, b: (i, j)),            # pe table
            ],
            out_specs=pl.BlockSpec((None, ts, td), lambda i, j, b: (b, i, j)),
        ),
        compiler_params=pltpu.CompilerParams(
            dimension_semantics=("parallel", "parallel", "parallel"),
        ),
        input_output_aliases=alias,
    )(x, pe2d)


def _add_pe_batch_major(x, pe_flat, out_dtype, budget_bytes, donate_x):
    """x: (B, S, D) with B >= 8; pe_flat: cached (1, S*D).  Grid (col-tiles, row-tiles)."""
    B, S, D = x.shape
    N = S * D
    itemsize = max(x.dtype.itemsize, out_dtype.itemsize)
    budget_elems = max(budget_bytes // itemsize, _SUBLANE * _LANE)
    tr, tc = _flat_tiles(B, N, budget_elems)
    grid = (pl.cdiv(N, tc), pl.cdiv(B, tr))      # row axis innermost -> PE block reused

    x2 = x.reshape(B, N)                         # contiguous view; no data movement
    alias = {0: 0} if (donate_x and out_dtype == x.dtype) else {}

    out2 = pl.pallas_call(
        _add_pe_kernel,
        out_shape=jax.ShapeDtypeStruct((B, N), out_dtype),
        grid_spec=pltpu.PrefetchScalarGridSpec(
            num_scalar_prefetch=0,
            grid=grid,
            in_specs=[
                pl.BlockSpec((tr, tc), lambda j, i: (i, j)),   # x (rows = batch)
                pl.BlockSpec((1, tc), lambda j, i: (0, j)),    # pe row, sublane-broadcast
            ],
            out_specs=pl.BlockSpec((tr, tc), lambda j, i: (i, j)),
        ),
        compiler_params=pltpu.CompilerParams(
            dimension_semantics=("parallel", "parallel"),
        ),
        input_output_aliases=alias,
    )(x2, pe_flat)
    return out2.reshape(B, S, D)


class PositionalEmbeddings:
    """JAX/Pallas port of the PyTorch PositionalEmbeddings module.

    forward(x) == x + pe[:, :x.shape[-2]] with PyTorch type promotion
    (pe is kept f32; the output dtype is promote_types(x.dtype, f32)).

    donate_x=True passes input_output_aliases={0: 0} to the kernel; pair it with
    donate_argnums at your jit boundary to write the result in place (no second
    B*S*D HBM buffer).  Without caller-side donation it is merely a hint.
    """

    def __init__(self, d_model: int, max_seq_len: int):
        assert d_model % 2 == 0
        self.d_model = d_model
        self.max_seq_len = max_seq_len
        self.pe = make_positional_embeddings(d_model, max_seq_len)   # (1, L, D) f32 buffer
        # Hoisted out of the per-call path: 2-D table + per-seq-len flattened cache.
        self._pe2d = self.pe[0]                                      # (L, D) f32
        self._flat_pe_cache: dict[int, jnp.ndarray] = {}

    def _flat_pe(self, seq_len: int) -> jnp.ndarray:
        pe2 = self._flat_pe_cache.get(seq_len)
        if pe2 is None:
            pe2 = self._pe2d[:seq_len].reshape(1, seq_len * self.d_model)
            self._flat_pe_cache[seq_len] = pe2
        return pe2

    def __call__(self, x: jnp.ndarray, *, block_bytes: int | None = None,
                 donate_x: bool = False) -> jnp.ndarray:
        B, S, D = x.shape
        assert D == self.d_model, "last dim must equal d_model"
        assert S <= self.max_seq_len, "sequence longer than max_seq_len"

        budget_bytes = block_bytes if block_bytes is not None else _default_block_bytes()
        out_dtype = jnp.promote_types(x.dtype, self.pe.dtype)   # PyTorch-style promotion

        # seq-major keeps lanes dense whenever D is lane-aligned and keeps sublanes
        # full for small-batch (B < 8) inference; batch-major flat restores lane
        # density over S*D when D is not lane-aligned but B is sublane-rich.
        use_seq_major = (D % _LANE == 0) or (B < _SUBLANE)
        if use_seq_major:
            return _add_pe_seq_major(x, self._pe2d, out_dtype, budget_bytes, donate_x)
        return _add_pe_batch_major(x, self._flat_pe(S), out_dtype, budget_bytes, donate_x)


if __name__ == "__main__":
    # (B, S, D), max_seq_len, block_bytes override (None -> auto), donate_x
    test_cases = [
        ((2, 8, 32), 16, None, False),           # original toy shape (seq-major, grid (1,1,2))
        ((2, 256, 256), 256, 128 * 1024, True),  # B<8 lane-aligned, multi S-tiles, aliased out
        ((16, 64, 96), 64, 64 * 1024, False),    # batch-major flat, multiple lane-dense col tiles
        ((3, 50, 40), 64, None, False),          # nothing aligned: masked tails, seq-major
        ((10, 7, 36), 16, None, False),          # nothing aligned: masked tails, batch-major
    ]

    key = jax.random.PRNGKey(0)
    for (B, S, D), max_len, blk, donate in test_cases:
        module = PositionalEmbeddings(D, max_len)
        key, sub = jax.random.split(key)
        x = jax.random.normal(sub, (B, S, D), dtype=jnp.float32)

        # Plain-JAX reference of the PyTorch forward (computed before the kernel).
        ref = x + module.pe[:, :S]

        out = module(x, block_bytes=blk, donate_x=donate)
        out = jax.block_until_ready(out)

        assert out.shape == (B, S, D)
        assert out.dtype == ref.dtype
        assert jnp.allclose(out, ref, atol=1e-6), f"mismatch vs reference for {(B, S, D)}"

    print("KERNEL_OK")
</pallas_src>

<mosaic_0001>
module attributes {stable_mosaic.version = 11 : i64} {
  func.func @_add_pe_kernel(%arg0: i32, %arg1: i32, %arg2: i32, %arg3: memref<1x8x32xf32, #tpu.memory_space<vmem>>, %arg4: memref<8x32xf32, #tpu.memory_space<vmem>>, %arg5: memref<1x8x32xf32, #tpu.memory_space<vmem>>) attributes {dimension_semantics = [#tpu.dimension_semantics<parallel>, #tpu.dimension_semantics<parallel>, #tpu.dimension_semantics<parallel>], iteration_bounds = array<i64: 1, 1, 2>, scalar_prefetch = 0 : i64, scratch_operands = 0 : i64, tpu.core_type = #tpu.core_type<tc>, window_params = [{transform_indices = @transform_0, window_bounds = array<i64: 1, 8, 32>}, {transform_indices = @transform_1, window_bounds = array<i64: 8, 32>}, {transform_indices = @transform_2, window_bounds = array<i64: 1, 8, 32>}]} {
    %c0 = arith.constant 0 : index
    %c0_0 = arith.constant 0 : index
    %c0_1 = arith.constant 0 : index
    %0 = vector.load %arg3[%c0, %c0_0, %c0_1] : memref<1x8x32xf32, #tpu.memory_space<vmem>>, vector<1x8x32xf32>
    %1 = vector.shape_cast %0 : vector<1x8x32xf32> to vector<8x32xf32>
    %c0_2 = arith.constant 0 : index
    %c0_3 = arith.constant 0 : index
    %2 = vector.load %arg4[%c0_2, %c0_3] : memref<8x32xf32, #tpu.memory_space<vmem>>, vector<8x32xf32>
    %3 = arith.addf %1, %2 : vector<8x32xf32>
    %c0_4 = arith.constant 0 : index
    %c0_5 = arith.constant 0 : index
    %c0_6 = arith.constant 0 : index
    %4 = vector.load %arg5[%c0_4, %c0_5, %c0_6] : memref<1x8x32xf32, #tpu.memory_space<vmem>>, vector<1x8x32xf32>
    %5 = vector.shape_cast %4 : vector<1x8x32xf32> to vector<8x32xf32>
    %6 = vector.shape_cast %3 : vector<8x32xf32> to vector<1x8x32xf32>
    tpu.vector_store %arg5[%c0_4, %c0_5, %c0_6], %6 {strides = array<i32>} : memref<1x8x32xf32, #tpu.memory_space<vmem>>, vector<1x8x32xf32>,
    return
  }
  func.func @transform_0(%arg0: i32, %arg1: i32, %arg2: i32) -> (i32, i32, i32) {
    %c0_i32 = arith.constant 0 : i32
    return %arg2, %arg0, %arg1 : i32, i32, i32
  }
  func.func @transform_1(%arg0: i32, %arg1: i32, %arg2: i32) -> (i32, i32) {
    %c0_i32 = arith.constant 0 : i32
    return %arg0, %arg1 : i32, i32
  }
  func.func @transform_2(%arg0: i32, %arg1: i32, %arg2: i32) -> (i32, i32, i32) {
    %c0_i32 = arith.constant 0 : i32
    return %arg2, %arg0, %arg1 : i32, i32, i32
  }
}

</mosaic_0001>

<llo_original>
// kernel: tpu_custom_call.1
$region0: #{tpu_custom_call.1}
  #allocation0 [shape = 'u32[]', space=smem, size = 0x4, offset = 0x4, fixed_abs, tag = 'smem constant byte address 0x4 - core index']
  #allocation1 [shape = 'u32[144,128]{1,0:T(1,128)}', space=vmem, size = 0x12000, scoped, tag = 'internal scratch']
  %s0 = inlined_call_operand.hbm [shape: f32[2,8,32], index: 0, kind: input, shape index: {}]
  %s1 = inlined_call_operand.hbm [shape: f32[16,32], index: 1, kind: input, shape index: {}]
  %s2 = inlined_call_operand.hbm [shape: f32[2,8,32], index: 2, kind: output, shape index: {}]
  %s3 = sld [smem:[#allocation0]]
  $region49: #{tpu_custom_call.1} parent=0
    _
  %s5 = ssub.s32 1, %s3
  %s6 = scalar_select 0, %s5, %s3
  $region1: #{tpu_custom_call.1} parent=0
    #allocation2 [shape = 'u8[8192]{0}', space=vmem, size = 0x2000, scoped, tag = 'input window, operand 0']
    #allocation3 [shape = 's32[2]{0}', space=sflag, size = 0x8, scoped, tag = 'scoped memory for tpu_custom_call.1']
    #allocation4 [shape = 's32[2]{0}', space=sflag, size = 0x8, scoped, tag = 'scoped memory for tpu_custom_call.1']
    #allocation5 [shape = 'u8[4096]{0}', space=vmem, size = 0x1000, scoped, tag = 'input window, operand 1, single buffered']
    #allocation6 [shape = 's32[1]{0}', space=sflag, size = 0x4, scoped, tag = 'scoped memory for tpu_custom_call.1']
    #allocation7 [shape = 'u8[8192]{0}', space=vmem, size = 0x2000, scoped, tag = 'output window, operand 0']
    %7 = vsyncpa [#allocation3], 0
    %s8 = scalar_lea.sflag [#allocation3], 1
    %9 = vsyncpa %s8, 0
    %10 = vsyncpa [#allocation6], 0
    %11 = vsyncpa [#allocation4], 0
    %s12 = scalar_lea.sflag [#allocation4], 1
    %13 = vsyncpa %s12, 0
    loop: start=0, step=1, limit=4
    $region2: #{tpu_custom_call.1} parent=1 // loop_pre_header
      _
    $region3: #{tpu_custom_call.1} parent=1 // loop_header
      %s15 = sphi 0, %s19
      %p16 = scmp.ge.s32.totalorder %s15, 4
      %s22 = sphi 0, %s41
      %s23 = sphi 0, %s37
      %s24 = sphi 0, %s33
      %s25 = sphi 0, %s22
      %s26 = sphi 0, %s23
      %s27 = sphi 0, %s24
      %s28 = sphi 0, %s25
      %s29 = sphi 0, %s26
      %s30 = sphi 0, %s27
      %s48 = sphi 0, %s50
      %s51 = sphi 0, %s48
      %s52 = sphi 0, %s51
      %s68 = sphi 0, %s52
      %s76 = sphi 0, %s78
      %s79 = sphi 0, %s76
      %s80 = sphi 0, %s79
      %s96 = sphi 0, %s80
      %s106 = sphi 0, %s108
      %s109 = sphi 0, %s106
      %s110 = sphi 0, %s109
      %s126 = sphi 0, %s110
    $region4: #{tpu_custom_call.1} parent=1 // loop_header_branch
      %18 = sbr.rel (%p16) target = $region8
    $region5: #{tpu_custom_call.1} parent=1 // loop_body
      %s20 = ssub.s32 %s15, 1
      %s21 = ssub.s32 %s15, 2
      %s31 = sadd.s32 1, %s24
      %p32 = scmp.ge.s32.totalorder %s31, 2
      %s33 = scalar_select %p32, 0, %s31
      %s34 = sadd.s32 1, %s23
      %s35 = scalar_select %p32, %s34, %s23
      %p36 = scmp.ge.s32.totalorder %s35, 1
      %s37 = scalar_select %p36, 0, %s35
      %s38 = sadd.s32 1, %s22
      %s39 = scalar_select %p36, %s38, %s22
      %p40 = scmp.ge.s32.totalorder %s39, 1
      %s41 = scalar_select %p40, 0, %s39
      %s42 = ssub.s32 %s24, %s33
      %s43 = ssub.s32 %s22, %s41
      %s44 = sor.u32 %s42, %s43
      %s45 = ssub.s32 %s23, %s37
      %s46 = sor.u32 %s44, %s45
      %p47 = scmp.eq.s32.totalorder %s46, 0
      %s49 = sadd.s32 %s48, 1
      %s50 = scalar_select %p47, %s48, %s49
      %p53 = pneg %p47
      %p54 = scmp.eq.s32.totalorder %s15, 1
      %p55 = por %p53, %p54
      %p56 = scmp.ne.s32.totalorder %s48, %s51
      %p57 = scmp.eq.s32.totalorder %s15, 0
      %p58 = por %p56, %p57
      %p59 = scmp.ne.s32.totalorder %s48, %s51
      %p60 = scmp.eq.s32.totalorder %s20, 1
      %p61 = por %p59, %p60
      %p62 = scmp.ne.s32.totalorder %s51, %s52
      %p63 = scmp.eq.s32.totalorder %s20, 0
      %p64 = por %p62, %p63
      %p65 = scmp.ne.s32.totalorder %s51, %s52
      %p66 = scmp.eq.s32.totalorder %s21, 1
      %p67 = por %p65, %p66
      %p69 = scmp.ne.s32.totalorder %s52, %s68
      %p70 = scmp.eq.s32.totalorder %s21, 0
      %p71 = por %p69, %p70
      %s72 = ssub.s32 %s22, %s41
      %s73 = ssub.s32 %s23, %s37
      %s74 = sor.u32 %s72, %s73
      %p75 = scmp.eq.s32.totalorder %s74, 0
      %s77 = sadd.s32 %s76, 1
      %s78 = scalar_select %p75, %s76, %s77
      %p81 = pneg %p75
      %p82 = scmp.eq.s32.totalorder %s15, 1
      %p83 = por %p81, %p82
      %p84 = scmp.ne.s32.totalorder %s76, %s79
      %p85 = scmp.eq.s32.totalorder %s15, 0
      %p86 = por %p84, %p85
      %p87 = scmp.ne.s32.totalorder %s76, %s79
      %p88 = scmp.eq.s32.totalorder %s20, 1
      %p89 = por %p87, %p88
      %p90 = scmp.ne.s32.totalorder %s79, %s80
      %p91 = scmp.eq.s32.totalorder %s20, 0
      %p92 = por %p90, %p91
      %p93 = scmp.ne.s32.totalorder %s79, %s80
      %p94 = scmp.eq.s32.totalorder %s21, 1
      %p95 = por %p93, %p94
      %p97 = scmp.ne.s32.totalorder %s80, %s96
      %p98 = scmp.eq.s32.totalorder %s21, 0
      %p99 = por %p97, %p98
      %s100 = ssub.s32 %s24, %s33
      %s101 = ssub.s32 %s22, %s41
      %s102 = sor.u32 %s100, %s101
      %s103 = ssub.s32 %s23, %s37
      %s104 = sor.u32 %s102, %s103
      %p105 = scmp.eq.s32.totalorder %s104, 0
      %s107 = sadd.s32 %s106, 1
      %s108 = scalar_select %p105, %s106, %s107
      %p111 = pneg %p105
      %p112 = scmp.eq.s32.totalorder %s15, 1
      %p113 = por %p111, %p112
      %p114 = scmp.ne.s32.totalorder %s106, %s109
      %p115 = scmp.eq.s32.totalorder %s15, 0
      %p116 = por %p114, %p115
      %p117 = scmp.ne.s32.totalorder %s106, %s109
      %p118 = scmp.eq.s32.totalorder %s20, 1
      %p119 = por %p117, %p118
      %p120 = scmp.ne.s32.totalorder %s109, %s110
      %p121 = scmp.eq.s32.totalorder %s20, 0
      %p122 = por %p120, %p121
      %p123 = scmp.ne.s32.totalorder %s109, %s110
      %p124 = scmp.eq.s32.totalorder %s21, 1
      %p125 = por %p123, %p124
      %p127 = scmp.ne.s32.totalorder %s110, %s126
      %p128 = scmp.eq.s32.totalorder %s21, 0
      %p129 = por %p127, %p128
      %p130 = scmp.le.s32.totalorder 1, %s15
      %p131 = scmp.lt.s32.totalorder %s15, 3
      %p132 = pnand %p130, %p131
      %p133 = pneg %p132
      // Predicated region
      $region9: #{tpu_custom_call.1} parent=5 // pred_check
        _
      $region10: #{tpu_custom_call.1} parent=5 // pred_check_branch
        %135 = sbr.rel (%p132) target = $region12
      $region11: #{tpu_custom_call.1} parent=5 // pred_region
        %s136 = ssub.s32 %s15, 1
        // Predicated region
        $region13: #{tpu_custom_call.1} parent=11 // pred_check
          %p137 = pneg %p92
        $region14: #{tpu_custom_call.1} parent=11 // pred_check_branch
          %139 = sbr.rel (%p137) target = $region16
        $region15: #{tpu_custom_call.1} parent=11 // pred_region
          %s141 = ssub.s32 128, 128
          %142 = vsyncadd [#allocation6], %s141
          %s143 = sadd.s32 %s26, %s25
          %s144 = smul.addr %s143, 128
          %s145 = scalar_lea.hbm %s1, %s144
          %s147 = sshll.u32 [#allocation5], 4
          %s148 = int_to_ptr.vmem [resolvable:$true] %s147
          %150 = dma.hbm_to_vmem [thread:$0]  %s145, 128, %s148, [#allocation6]
        $region16: #{tpu_custom_call.1} parent=11 // pred_fallthru
          _
      $region12: #{tpu_custom_call.1} parent=5 // pred_fallthru
        _
      %p151 = scmp.lt.s32.totalorder %s15, 2
      // Predicated region
      $region17: #{tpu_custom_call.1} parent=5 // pred_check
        %p152 = pneg %p151
      $region18: #{tpu_custom_call.1} parent=5 // pred_check_branch
        %154 = sbr.rel (%p152) target = $region20
      $region19: #{tpu_custom_call.1} parent=5 // pred_region
        // Predicated region
        $region21: #{tpu_custom_call.1} parent=19 // pred_check
          %p155 = pneg %p58
        $region22: #{tpu_custom_call.1} parent=19 // pred_check_branch
          %157 = sbr.rel (%p155) target = $region24
        $region23: #{tpu_custom_call.1} parent=19 // pred_region
          %s158 = sand.u32 %s48, 1
          %s159 = scalar_lea.sflag [#allocation3], %s158
          %s160 = sand.u32 %s48, 1
          %s161 = smul.addr %s160, 8
          %s162 = scalar_lea.vmem [#allocation2], %s161
          %s164 = ssub.s32 128, 128
          %165 = vsyncadd %s159, %s164
          %s166 = sadd.s32 %s23, %s22
          %s167 = sadd.s32 %s166, %s24
          %s168 = smul.addr %s167, 128
          %s169 = scalar_lea.hbm %s0, %s168
          %s171 = sshll.u32 %s162, 4
          %s172 = int_to_ptr.vmem [resolvable:$true] %s171
          %174 = dma.hbm_to_vmem [thread:$0]  %s169, 128, %s172, %s159
        $region24: #{tpu_custom_call.1} parent=19 // pred_fallthru
          _
      $region20: #{tpu_custom_call.1} parent=5 // pred_fallthru
        _
      %p175 = scmp.le.s32.totalorder 1, %s15
      %p176 = scmp.lt.s32.totalorder %s15, 3
      %p177 = pnand %p175, %p176
      %p178 = pneg %p177
      // Predicated region
      $region25: #{tpu_custom_call.1} parent=5 // pred_check
        _
      $region26: #{tpu_custom_call.1} parent=5 // pred_check_branch
        %180 = sbr.rel (%p177) target = $region28
      $region27: #{tpu_custom_call.1} parent=5 // pred_region
        %s181 = ssub.s32 %s15, 1
        %s182 = sand.u32 %s51, 1
        %s183 = scalar_lea.sflag [#allocation3], %s182
        %s184 = sand.u32 %s51, 1
        %s185 = smul.addr %s184, 8
        %s186 = scalar_lea.vmem [#allocation2], %s185
        // Predicated region
        $region29: #{tpu_custom_call.1} parent=27 // pred_check
          %p187 = pneg %p64
        $region30: #{tpu_custom_call.1} parent=27 // pred_check_branch
          %189 = sbr.rel (%p187) target = $region32
        $region31: #{tpu_custom_call.1} parent=27 // pred_region
          %190 = dma.done %s183, 128
        $region32: #{tpu_custom_call.1} parent=27 // pred_fallthru
          _
        // Predicated region
        $region33: #{tpu_custom_call.1} parent=27 // pred_check
          %p191 = pneg %p92
        $region34: #{tpu_custom_call.1} parent=27 // pred_check_branch
          %193 = sbr.rel (%p191) target = $region36
        $region35: #{tpu_custom_call.1} parent=27 // pred_region
          %194 = dma.done [#allocation6], 128
        $region36: #{tpu_custom_call.1} parent=27 // pred_fallthru
          _
        %s195 = sand.u32 %s51, 1
        %s196 = scalar_lea.sflag [#allocation3], %s195
        %s197 = sand.u32 %s51, 1
        %s198 = smul.addr %s197, 8
        %s199 = scalar_lea.vmem [#allocation2], %s198
        %p200 = pneg %p64
        %p201 = pneg %p61
        %p202 = pneg %p92
        %p203 = pneg %p89
        %p204 = pneg %p122
        %p205 = pneg %p119
        %s206 = sand.u32 %s109, 1
        %s207 = scalar_lea.sflag [#allocation4], %s206
        %s208 = sand.u32 %s109, 1
        %s209 = smul.addr %s208, 8
        %s210 = scalar_lea.vmem [#allocation7], %s209
        %v211 = vld [vmem:[%s186] sm:$0xff]
        %v212 = vld [vmem:[#allocation5] sm:$0xff]
        %v213 = vadd.f32 %v211, %v212
        %vm214 = vcmask 261120
        %215 = vst.msk [vmem:[%s210] sm:$0xff] %vm214, %v213
        %s216 = sand.u32 %s109, 1
        %s217 = scalar_lea.sflag [#allocation4], %s216
        %s218 = sand.u32 %s109, 1
        %s219 = smul.addr %s218, 8
        %s220 = scalar_lea.vmem [#allocation7], %s219
        // Predicated region
        $region37: #{tpu_custom_call.1} parent=27 // pred_check
          %p221 = pneg %p119
        $region38: #{tpu_custom_call.1} parent=27 // pred_check_branch
          %223 = sbr.rel (%p221) target = $region40
        $region39: #{tpu_custom_call.1} parent=27 // pred_region
          %s225 = ssub.s32 128, 128
          %226 = vsyncadd %s217, %s225
          %s227 = sadd.s32 %s26, %s25
          %s228 = sadd.s32 %s227, %s27
          %s229 = smul.addr %s228, 128
          %s230 = scalar_lea.hbm %s2, %s229
          %s232 = sshll.u32 %s220, 4
          %s233 = int_to_ptr.vmem [resolvable:$true] %s232
          %235 = dma.vmem_to_hbm [thread:$0]  %s233, 128, %s230, %s217
        $region40: #{tpu_custom_call.1} parent=27 // pred_fallthru
          _
      $region28: #{tpu_custom_call.1} parent=5 // pred_fallthru
        _
      %p236 = scmp.le.s32.totalorder 2, %s15
      // Predicated region
      $region41: #{tpu_custom_call.1} parent=5 // pred_check
        %p237 = pneg %p236
      $region42: #{tpu_custom_call.1} parent=5 // pred_check_branch
        %239 = sbr.rel (%p237) target = $region44
      $region43: #{tpu_custom_call.1} parent=5 // pred_region
        %s240 = ssub.s32 %s15, 2
        // Predicated region
        $region45: #{tpu_custom_call.1} parent=43 // pred_check
          %p241 = pneg %p125
        $region46: #{tpu_custom_call.1} parent=43 // pred_check_branch
          %243 = sbr.rel (%p241) target = $region48
        $region47: #{tpu_custom_call.1} parent=43 // pred_region
          %s244 = sand.u32 %s110, 1
          %s245 = scalar_lea.sflag [#allocation4], %s244
          %s246 = sand.u32 %s110, 1
          %s247 = smul.addr %s246, 8
          %s248 = scalar_lea.vmem [#allocation7], %s247
          %249 = dma.done %s245, 128
        $region48: #{tpu_custom_call.1} parent=43 // pred_fallthru
          _
      $region44: #{tpu_custom_call.1} parent=5 // pred_fallthru
        _
    $region6: #{tpu_custom_call.1} parent=1 // loop_footer
      %s19 = sadd.s32 1, %s15
    $region7: #{tpu_custom_call.1} parent=1 // loop_footer_branch
      %14 = sbr.rel target = $region3
    $region8: #{tpu_custom_call.1} parent=1 // loop_exit
      _
    %250 = vsyncpa [#allocation3], 1
    %s251 = scalar_lea.sflag [#allocation3], 1
    %252 = vsyncpa %s251, 1
    %253 = vsyncpa [#allocation6], 1
    %254 = vsyncpa [#allocation4], 1
    %s255 = scalar_lea.sflag [#allocation4], 1
    %256 = vsyncpa %s255, 1

</llo_original>
